<compile_context>
chip_gen: v7x
topology: tpu7x:2x2x1
jax: 0.10.0
libtpu: 0.0.40
codegen_flags: <defaults>
</compile_context>

<pallas_src>
import functools
import math

import jax
import jax.numpy as jnp
from jax.experimental import pallas as pl
from jax.experimental.pallas import tpu as pltpu

_INV_SQRT2 = 1.0 / math.sqrt(2.0)


def _round_up(n, m):
    return ((n + m - 1) // m) * m


# --------------------------------------------------------------------------
# Kernel body: h = x @ W1 + b1 ; g = GELU(h) ; out = g @ W2 + b2
# --------------------------------------------------------------------------
def _embed_fc_kernel(x_ref, w1_ref, b1_ref, w2_ref, b2_ref, o_ref, *,
                     precision, approx_gelu):
    h = jnp.dot(x_ref[...], w1_ref[...],
                preferred_element_type=jnp.float32, precision=precision)
    h = h + b1_ref[...]
    if approx_gelu:
        # tanh-approx GELU (EUP slot, cheaper than the erf polynomial on the
        # VPU) -- opt-in only, changes numerics vs torch's erf default.
        g = 0.5 * h * (1.0 + jnp.tanh(0.7978845608028654
                                      * (h + 0.044715 * h * h * h)))
    else:
        # Exact (erf-based) GELU, matching torch.nn.GELU() default.
        g = 0.5 * h * (1.0 + jax.lax.erf(h * _INV_SQRT2))
    out = jnp.dot(g.astype(w2_ref.dtype), w2_ref[...],
                  preferred_element_type=jnp.float32, precision=precision)
    out = out + b2_ref[...]
    o_ref[...] = out.astype(o_ref.dtype)


# --------------------------------------------------------------------------
# One-time parameter prep (hoisted out of the per-call path).
# --------------------------------------------------------------------------
def prepare_embed_fc_params(w1, b1, w2, b2, *, use_bf16=False):
    """Pad feature dims to 128-lane multiples once; optional bf16 weight cast.

    w1: (in_dim, out_dim), w2: (out_dim, out_dim) -- i.e. PyTorch nn.Linear
    weights already transposed to (in, out).  Padded hidden columns are
    exactly zero (bias pad 0, GELU(0) = 0) and W2's pad rows are zero, so the
    padded output columns are zero and get sliced off by the caller.
    """
    in_dim, out_dim = w1.shape
    out_pad = _round_up(out_dim, 128)
    pad_c = out_pad - out_dim
    w_dtype = jnp.bfloat16 if use_bf16 else w1.dtype

    w1p = jnp.pad(w1, ((0, 0), (0, pad_c))).astype(w_dtype)
    w2p = jnp.pad(w2, ((0, pad_c), (0, pad_c))).astype(w_dtype)
    # Biases stay f32 (added post-MXU in f32 regardless of the bf16 path).
    b1p = jnp.pad(b1.astype(jnp.float32).reshape(1, out_dim),
                  ((0, 0), (0, pad_c)))
    b2p = jnp.pad(b2.astype(jnp.float32).reshape(1, out_dim),
                  ((0, 0), (0, pad_c)))
    return {"w1": w1p, "b1": b1p, "w2": w2p, "b2": b2p,
            "in_dim": in_dim, "out_dim": out_dim, "use_bf16": use_bf16}


# --------------------------------------------------------------------------
# Tiling / VMEM accounting.
# --------------------------------------------------------------------------
_VMEM_TILE_BUDGET = 48 << 20   # conservative: fits v7x's 64 MiB physical VMEM


def _weight_bytes(in_dim, out_pad, w_itemsize):
    return (in_dim * out_pad + out_pad * out_pad) * w_itemsize + 2 * out_pad * 4


def _choose_tile_rows(B, in_dim, out_pad, block_rows, x_itemsize, w_itemsize):
    b8 = _round_up(max(B, 1), 8)
    tb = max(8, min(_round_up(block_rows, 8), b8))
    weights = _weight_bytes(in_dim, out_pad, w_itemsize)

    def need(t):
        io = 2 * t * in_dim * x_itemsize + 2 * t * out_pad * 4  # dbl-buf x/out
        scratch = 2 * t * out_pad * 4                            # h, g (f32)
        return io + weights + scratch

    # Shrink the row tile until the plan fits the (v7x-safe) VMEM budget.
    while tb > 8 and need(tb) > _VMEM_TILE_BUDGET:
        tb = _round_up(max(tb // 2, 8), 8)
    # Megacore: give the "parallel" batch axis >= 2 grid steps when B allows
    # (otherwise one v7x TensorCore idles); negligible cost on v5e/v6e.
    if b8 >= 16 and tb >= b8:
        tb = _round_up((b8 + 1) // 2, 8)
    # Cap batch-padding waste at ~12.5% of B (minimum one 8-row group).
    while tb > 8 and (_round_up(B, tb) - B) > max(8, B // 8):
        tb = _round_up(max(tb // 2, 8), 8)
    return tb


def _vmem_limit_bytes(tb, in_dim, out_pad, x_itemsize, w_itemsize):
    io = 2 * tb * in_dim * x_itemsize + 2 * tb * out_pad * 4
    weights = _weight_bytes(in_dim, out_pad, w_itemsize)
    scratch = 2 * tb * out_pad * 4
    # Assume worst case (double-buffered weights, i.e. the fallback path) and
    # ~30% headroom; floor at the 32 MiB default, cap at v7x's 64 MiB physical.
    need = int((io + 2 * weights + scratch) * 1.3)
    return max(32 << 20, min(need, 64 << 20))


# --------------------------------------------------------------------------
# Wrapper.
# --------------------------------------------------------------------------
def embed_fc(x, params, *, block_rows=1024, precision=None, approx_gelu=False):
    """x: (..., *) -> (B, out_dim), B = x.size // in_dim (matches torch)."""
    in_dim, out_dim = params["in_dim"], params["out_dim"]
    w1p, b1p, w2p, b2p = params["w1"], params["b1"], params["w2"], params["b2"]
    out_pad = w1p.shape[1]
    out_dtype = x.dtype

    x2 = x.reshape(-1, in_dim)
    if params["use_bf16"]:
        x2 = x2.astype(jnp.bfloat16)
    B = x2.shape[0]

    tb = _choose_tile_rows(B, in_dim, out_pad, block_rows,
                           x2.dtype.itemsize, w1p.dtype.itemsize)
    b_pad = _round_up(B, tb)
    if b_pad != B:
        x2 = jnp.pad(x2, ((0, b_pad - B), (0, 0)))
    grid = (b_pad // tb,)

    vmem_limit = _vmem_limit_bytes(tb, in_dim, out_pad,
                                   x2.dtype.itemsize, w1p.dtype.itemsize)
    kernel = functools.partial(_embed_fc_kernel,
                               precision=precision, approx_gelu=approx_gelu)

    def build_and_call(weight_mode):
        def wspec(shape):
            # Constant index_map -> DMA'd once, VMEM-resident across all tiles.
            return pl.BlockSpec(shape, lambda i: (0, 0),
                                pipeline_mode=weight_mode)

        return pl.pallas_call(
            kernel,
            out_shape=jax.ShapeDtypeStruct((b_pad, out_pad), out_dtype),
            grid_spec=pltpu.PrefetchScalarGridSpec(
                num_scalar_prefetch=0,
                grid=grid,
                in_specs=[
                    # x: walks the batch dimension with the grid.
                    pl.BlockSpec((tb, in_dim), lambda i: (i, 0)),
                    wspec((in_dim, out_pad)),   # W1
                    wspec((1, out_pad)),        # b1
                    wspec((out_pad, out_pad)),  # W2
                    wspec((1, out_pad)),        # b2
                ],
                out_specs=pl.BlockSpec((tb, out_pad), lambda i: (i, 0)),
            ),
            compiler_params=pltpu.CompilerParams(
                dimension_semantics=("parallel",),
                vmem_limit_bytes=vmem_limit,
            ),
        )(x2, w1p, b1p, w2p, b2p)

    try:
        # Single-buffer the grid-invariant weights/biases (half the VMEM).
        out = build_and_call(pl.Buffered(1))
    except Exception:
        # Fallback: default double-buffering (always supported).
        out = build_and_call(None)

    return out[:B, :out_dim]


# --------------------------------------------------------------------------
# Demo / correctness check.
# --------------------------------------------------------------------------
if __name__ == "__main__":
    key = jax.random.PRNGKey(0)
    k_x, k_w1, k_b1, k_w2, k_b2 = jax.random.split(key, 5)

    in_dim, out_dim = 64, 32
    # (2, 4, 16, 16) -> reshape(-1, 64) -> (32, 64) rows through the MLP.
    x = jax.random.normal(k_x, (2, 4, 16, 16), dtype=jnp.float32)

    # Deterministic parameter init (PyTorch-style uniform bounds), stored (in, out).
    lim1 = 1.0 / math.sqrt(in_dim)
    lim2 = 1.0 / math.sqrt(out_dim)
    w1 = jax.random.uniform(k_w1, (in_dim, out_dim), jnp.float32, -lim1, lim1)
    b1 = jax.random.uniform(k_b1, (out_dim,), jnp.float32, -lim1, lim1)
    w2 = jax.random.uniform(k_w2, (out_dim, out_dim), jnp.float32, -lim2, lim2)
    b2 = jax.random.uniform(k_b2, (out_dim,), jnp.float32, -lim2, lim2)

    # One-time prep (padding / layout) -- hoisted out of the per-call path.
    params = prepare_embed_fc_params(w1, b1, w2, b2, use_bf16=False)

    out = embed_fc(x, params)
    out = jax.block_until_ready(out)

    # Pure-JAX reference of the same math (f32, erf GELU).
    x2 = x.reshape(-1, in_dim)
    h = x2 @ w1 + b1
    g = 0.5 * h * (1.0 + jax.lax.erf(h / math.sqrt(2.0)))
    ref = g @ w2 + b2
    assert out.shape == (x2.shape[0], out_dim)
    assert jnp.allclose(out, ref, atol=1e-5, rtol=1e-5)

    print("KERNEL_OK")
</pallas_src>

<mosaic_0001>
module attributes {stable_mosaic.version = 11 : i64} {
  func.func @_embed_fc_kernel(%arg0: i32, %arg1: memref<16x64xf32, #tpu.memory_space<vmem>>, %arg2: memref<64x128xf32, #tpu.memory_space<vmem>>, %arg3: memref<1x128xf32, #tpu.memory_space<vmem>>, %arg4: memref<128x128xf32, #tpu.memory_space<vmem>>, %arg5: memref<1x128xf32, #tpu.memory_space<vmem>>, %arg6: memref<16x128xf32, #tpu.memory_space<vmem>>) attributes {dimension_semantics = [#tpu.dimension_semantics<parallel>], iteration_bounds = array<i64: 2>, scalar_prefetch = 0 : i64, scratch_operands = 0 : i64, tpu.core_type = #tpu.core_type<tc>, window_params = [{transform_indices = @transform_0, window_bounds = array<i64: 16, 64>}, {pipeline_mode = #tpu.pipeline_mode<synchronous>, transform_indices = @transform_1, window_bounds = array<i64: 64, 128>}, {pipeline_mode = #tpu.pipeline_mode<synchronous>, transform_indices = @transform_2, window_bounds = array<i64: 1, 128>}, {pipeline_mode = #tpu.pipeline_mode<synchronous>, transform_indices = @transform_3, window_bounds = array<i64: 128, 128>}, {pipeline_mode = #tpu.pipeline_mode<synchronous>, transform_indices = @transform_4, window_bounds = array<i64: 1, 128>}, {transform_indices = @transform_5, window_bounds = array<i64: 16, 128>}]} {
    %c0 = arith.constant 0 : index
    %c0_0 = arith.constant 0 : index
    %0 = vector.load %arg1[%c0, %c0_0] : memref<16x64xf32, #tpu.memory_space<vmem>>, vector<16x64xf32>
    %c0_1 = arith.constant 0 : index
    %c0_2 = arith.constant 0 : index
    %1 = vector.load %arg2[%c0_1, %c0_2] : memref<64x128xf32, #tpu.memory_space<vmem>>, vector<64x128xf32>
    %cst = arith.constant dense<0.000000e+00> : vector<16x128xf32>
    %2 = tpu.matmul %0, %1, %cst {dimension_numbers = #tpu.dot_dimension_numbers<[1], [0], [0], [1], [0, 0, 1, 1], [], []>} : vector<16x64xf32>, vector<64x128xf32>, vector<16x128xf32> -> vector<16x128xf32>
    %c0_3 = arith.constant 0 : index
    %c0_4 = arith.constant 0 : index
    %3 = vector.load %arg3[%c0_3, %c0_4] : memref<1x128xf32, #tpu.memory_space<vmem>>, vector<1x128xf32>
    %4 = vector.broadcast %3 : vector<1x128xf32> to vector<16x128xf32>
    %5 = arith.addf %2, %4 : vector<16x128xf32>
    %cst_5 = arith.constant 5.000000e-01 : f32
    %6 = vector.broadcast %cst_5 : f32 to vector<16x128xf32>
    %7 = arith.mulf %6, %5 : vector<16x128xf32>
    %cst_6 = arith.constant 0.707106769 : f32
    %8 = vector.broadcast %cst_6 : f32 to vector<16x128xf32>
    %9 = arith.mulf %5, %8 : vector<16x128xf32>
    %10 = math.erf %9 : vector<16x128xf32>
    %cst_7 = arith.constant 1.000000e+00 : f32
    %11 = vector.broadcast %cst_7 : f32 to vector<16x128xf32>
    %12 = arith.addf %11, %10 : vector<16x128xf32>
    %13 = arith.mulf %7, %12 : vector<16x128xf32>
    %c0_8 = arith.constant 0 : index
    %c0_9 = arith.constant 0 : index
    %14 = vector.load %arg4[%c0_8, %c0_9] : memref<128x128xf32, #tpu.memory_space<vmem>>, vector<128x128xf32>
    %cst_10 = arith.constant dense<0.000000e+00> : vector<16x128xf32>
    %15 = tpu.matmul %13, %14, %cst_10 {dimension_numbers = #tpu.dot_dimension_numbers<[1], [0], [0], [1], [0, 0, 1, 1], [], []>} : vector<16x128xf32>, vector<128x128xf32>, vector<16x128xf32> -> vector<16x128xf32>
    %c0_11 = arith.constant 0 : index
    %c0_12 = arith.constant 0 : index
    %16 = vector.load %arg5[%c0_11, %c0_12] : memref<1x128xf32, #tpu.memory_space<vmem>>, vector<1x128xf32>
    %17 = vector.broadcast %16 : vector<1x128xf32> to vector<16x128xf32>
    %18 = arith.addf %15, %17 : vector<16x128xf32>
    %c0_13 = arith.constant 0 : index
    %c0_14 = arith.constant 0 : index
    %19 = vector.load %arg6[%c0_13, %c0_14] : memref<16x128xf32, #tpu.memory_space<vmem>>, vector<16x128xf32>
    tpu.vector_store %arg6[%c0_13, %c0_14], %18 {strides = array<i32>} : memref<16x128xf32, #tpu.memory_space<vmem>>, vector<16x128xf32>,
    return
  }
  func.func @transform_0(%arg0: i32) -> (i32, i32) {
    %c0_i32 = arith.constant 0 : i32
    %c0_i32_0 = arith.constant 0 : i32
    return %arg0, %c0_i32 : i32, i32
  }
  func.func @transform_1(%arg0: i32) -> (i32, i32) {
    %c0_i32 = arith.constant 0 : i32
    %c0_i32_0 = arith.constant 0 : i32
    %c0_i32_1 = arith.constant 0 : i32
    return %c0_i32, %c0_i32_0 : i32, i32
  }
  func.func @transform_2(%arg0: i32) -> (i32, i32) {
    %c0_i32 = arith.constant 0 : i32
    %c0_i32_0 = arith.constant 0 : i32
    %c0_i32_1 = arith.constant 0 : i32
    return %c0_i32, %c0_i32_0 : i32, i32
  }
  func.func @transform_3(%arg0: i32) -> (i32, i32) {
    %c0_i32 = arith.constant 0 : i32
    %c0_i32_0 = arith.constant 0 : i32
    %c0_i32_1 = arith.constant 0 : i32
    return %c0_i32, %c0_i32_0 : i32, i32
  }
  func.func @transform_4(%arg0: i32) -> (i32, i32) {
    %c0_i32 = arith.constant 0 : i32
    %c0_i32_0 = arith.constant 0 : i32
    %c0_i32_1 = arith.constant 0 : i32
    return %c0_i32, %c0_i32_0 : i32, i32
  }
  func.func @transform_5(%arg0: i32) -> (i32, i32) {
    %c0_i32 = arith.constant 0 : i32
    %c0_i32_0 = arith.constant 0 : i32
    return %arg0, %c0_i32 : i32, i32
  }
}

module attributes {stable_mosaic.version = 11 : i64} {
  func.func @_embed_fc_kernel(%arg0: i32, %arg1: memref<16x64xf32, #tpu.memory_space<vmem>>, %arg2: memref<64x128xf32, #tpu.memory_space<vmem>>, %arg3: memref<1x128xf32, #tpu.memory_space<vmem>>, %arg4: memref<128x128xf32, #tpu.memory_space<vmem>>, %arg5: memref<1x128xf32, #tpu.memory_space<vmem>>, %arg6: memref<16x128xf32, #tpu.memory_space<vmem>>) attributes {dimension_semantics = [#tpu.dimension_semantics<parallel>], iteration_bounds = array<i64: 2>, scalar_prefetch = 0 : i64, scratch_operands = 0 : i64, tpu.core_type = #tpu.core_type<tc>, window_params = [{transform_indices = @transform_0, window_bounds = array<i64: 16, 64>}, {pipeline_mode = #tpu.pipeline_mode<synchronous>, transform_indices = @transform_1, window_bounds = array<i64: 64, 128>}, {pipeline_mode = #tpu.pipeline_mode<synchronous>, transform_indices = @transform_2, window_bounds = array<i64: 1, 128>}, {pipeline_mode = #tpu.pipeline_mode<synchronous>, transform_indices = @transform_3, window_bounds = array<i64: 128, 128>}, {pipeline_mode = #tpu.pipeline_mode<synchronous>, transform_indices = @transform_4, window_bounds = array<i64: 1, 128>}, {transform_indices = @transform_5, window_bounds = array<i64: 16, 128>}]} {
    %c0 = arith.constant 0 : index
    %c0_0 = arith.constant 0 : index
    %0 = vector.load %arg1[%c0, %c0_0] : memref<16x64xf32, #tpu.memory_space<vmem>>, vector<16x64xf32>
    %c0_1 = arith.constant 0 : index
    %c0_2 = arith.constant 0 : index
    %1 = vector.load %arg2[%c0_1, %c0_2] : memref<64x128xf32, #tpu.memory_space<vmem>>, vector<64x128xf32>
    %cst = arith.constant dense<0.000000e+00> : vector<16x128xf32>
    %2 = tpu.matmul %0, %1, %cst {dimension_numbers = #tpu.dot_dimension_numbers<[1], [0], [0], [1], [0, 0, 1, 1], [], []>} : vector<16x64xf32>, vector<64x128xf32>, vector<16x128xf32> -> vector<16x128xf32>
    %c0_3 = arith.constant 0 : index
    %c0_4 = arith.constant 0 : index
    %3 = vector.load %arg3[%c0_3, %c0_4] : memref<1x128xf32, #tpu.memory_space<vmem>>, vector<1x128xf32>
    %4 = vector.broadcast %3 : vector<1x128xf32> to vector<16x128xf32>
    %5 = arith.addf %2, %4 : vector<16x128xf32>
    %cst_5 = arith.constant 5.000000e-01 : f32
    %6 = vector.broadcast %cst_5 : f32 to vector<16x128xf32>
    %7 = arith.mulf %6, %5 : vector<16x128xf32>
    %cst_6 = arith.constant 0.707106769 : f32
    %8 = vector.broadcast %cst_6 : f32 to vector<16x128xf32>
    %9 = arith.mulf %5, %8 : vector<16x128xf32>
    %10 = math.erf %9 : vector<16x128xf32>
    %cst_7 = arith.constant 1.000000e+00 : f32
    %11 = vector.broadcast %cst_7 : f32 to vector<16x128xf32>
    %12 = arith.addf %11, %10 : vector<16x128xf32>
    %13 = arith.mulf %7, %12 : vector<16x128xf32>
    %c0_8 = arith.constant 0 : index
    %c0_9 = arith.constant 0 : index
    %14 = vector.load %arg4[%c0_8, %c0_9] : memref<128x128xf32, #tpu.memory_space<vmem>>, vector<128x128xf32>
    %cst_10 = arith.constant dense<0.000000e+00> : vector<16x128xf32>
    %15 = tpu.matmul %13, %14, %cst_10 {dimension_numbers = #tpu.dot_dimension_numbers<[1], [0], [0], [1], [0, 0, 1, 1], [], []>} : vector<16x128xf32>, vector<128x128xf32>, vector<16x128xf32> -> vector<16x128xf32>
    %c0_11 = arith.constant 0 : index
    %c0_12 = arith.constant 0 : index
    %16 = vector.load %arg5[%c0_11, %c0_12] : memref<1x128xf32, #tpu.memory_space<vmem>>, vector<1x128xf32>
    %17 = vector.broadcast %16 : vector<1x128xf32> to vector<16x128xf32>
    %18 = arith.addf %15, %17 : vector<16x128xf32>
    %c0_13 = arith.constant 0 : index
    %c0_14 = arith.constant 0 : index
    %19 = vector.load %arg6[%c0_13, %c0_14] : memref<16x128xf32, #tpu.memory_space<vmem>>, vector<16x128xf32>
    tpu.vector_store %arg6[%c0_13, %c0_14], %18 {strides = array<i32>} : memref<16x128xf32, #tpu.memory_space<vmem>>, vector<16x128xf32>,
    return
  }
  func.func @transform_0(%arg0: i32) -> (i32, i32) {
    %c0_i32 = arith.constant 0 : i32
    %c0_i32_0 = arith.constant 0 : i32
    return %arg0, %c0_i32 : i32, i32
  }
  func.func @transform_1(%arg0: i32) -> (i32, i32) {
    %c0_i32 = arith.constant 0 : i32
    %c0_i32_0 = arith.constant 0 : i32
    %c0_i32_1 = arith.constant 0 : i32
    return %c0_i32, %c0_i32_0 : i32, i32
  }
  func.func @transform_2(%arg0: i32) -> (i32, i32) {
    %c0_i32 = arith.constant 0 : i32
    %c0_i32_0 = arith.constant 0 : i32
    %c0_i32_1 = arith.constant 0 : i32
    return %c0_i32, %c0_i32_0 : i32, i32
  }
  func.func @transform_3(%arg0: i32) -> (i32, i32) {
    %c0_i32 = arith.constant 0 : i32
    %c0_i32_0 = arith.constant 0 : i32
    %c0_i32_1 = arith.constant 0 : i32
    return %c0_i32, %c0_i32_0 : i32, i32
  }
  func.func @transform_4(%arg0: i32) -> (i32, i32) {
    %c0_i32 = arith.constant 0 : i32
    %c0_i32_0 = arith.constant 0 : i32
    %c0_i32_1 = arith.constant 0 : i32
    return %c0_i32, %c0_i32_0 : i32, i32
  }
  func.func @transform_5(%arg0: i32) -> (i32, i32) {
    %c0_i32 = arith.constant 0 : i32
    %c0_i32_0 = arith.constant 0 : i32
    return %arg0, %c0_i32 : i32, i32
  }
}

</mosaic_0001>

<llo_original>
// kernel: tpu_custom_call.1
$region0: #{tpu_custom_call.1}
  #allocation0 [shape = 'u32[]', space=smem, size = 0x4, offset = 0x4, fixed_abs, tag = 'smem constant byte address 0x4 - core index']
  #allocation1 [shape = 'u32[144,128]{1,0:T(1,128)}', space=vmem, size = 0x12000, scoped, tag = 'internal scratch']
  %s0 = inlined_call_operand.hbm [shape: f32[32,64], index: 0, kind: input, shape index: {}]
  %s1 = inlined_call_operand.hbm [shape: f32[64,128], index: 1, kind: input, shape index: {}]
  %s2 = inlined_call_operand.vmem [shape: f32[1,128], index: 2, kind: input, shape index: {}]
  %s3 = inlined_call_operand.hbm [shape: f32[128,128], index: 3, kind: input, shape index: {}]
  %s4 = inlined_call_operand.vmem [shape: f32[1,128], index: 4, kind: input, shape index: {}]
  %s5 = inlined_call_operand.hbm [shape: f32[32,128], index: 5, kind: output, shape index: {}]
  %s6 = sld [smem:[#allocation0]]
  $region65: #{tpu_custom_call.1} parent=0
    _
  %s8 = ssub.s32 1, %s6
  %s9 = scalar_select 0, %s8, %s6
  $region1: #{tpu_custom_call.1} parent=0
    #allocation2 [shape = 'u8[16384]{0}', space=vmem, size = 0x4000, scoped, tag = 'input window, operand 0']
    #allocation3 [shape = 's32[2]{0}', space=sflag, size = 0x8, scoped, tag = 'scoped memory for tpu_custom_call.1']
    #allocation4 [shape = 's32[2]{0}', space=sflag, size = 0x8, scoped, tag = 'scoped memory for tpu_custom_call.1']
    #allocation5 [shape = 'u8[32768]{0}', space=vmem, size = 0x8000, scoped, tag = 'input window, operand 1, single buffered']
    #allocation6 [shape = 's32[1]{0}', space=sflag, size = 0x4, scoped, tag = 'scoped memory for tpu_custom_call.1']
    #allocation7 [shape = 'u8[65536]{0}', space=vmem, size = 0x10000, scoped, tag = 'input window, operand 3, single buffered']
    #allocation8 [shape = 'u8[16384]{0}', space=vmem, size = 0x4000, scoped, tag = 'output window, operand 0']
    %10 = vsyncpa [#allocation3], 0
    %s11 = scalar_lea.sflag [#allocation3], 1
    %12 = vsyncpa %s11, 0
    %13 = vsyncpa [#allocation6], 0
    %14 = vsyncpa [#allocation4], 0
    %s15 = scalar_lea.sflag [#allocation4], 1
    %16 = vsyncpa %s15, 0
    loop: start=0, step=1, limit=4
    $region2: #{tpu_custom_call.1} parent=1 // loop_pre_header
      _
    $region3: #{tpu_custom_call.1} parent=1 // loop_header
      %s18 = sphi 0, %s22
      %p19 = scmp.ge.s32.totalorder %s18, 4
      %s28 = sphi 0, %s30
      %s31 = sphi 0, %s28
      %s32 = sphi 0, %s31
      %s48 = sphi 0, %s32
      %s52 = sphi 0, %s52
      %s54 = sphi 0, %s52
      %s55 = sphi 0, %s54
      %s69 = sphi 0, %s55
      %s73 = sphi 0, %s73
      %s75 = sphi 0, %s73
      %s76 = sphi 0, %s75
      %s90 = sphi 0, %s76
      %s94 = sphi 0, %s94
      %s96 = sphi 0, %s94
      %s97 = sphi 0, %s96
      %s111 = sphi 0, %s97
      %s115 = sphi 0, %s115
      %s117 = sphi 0, %s115
      %s118 = sphi 0, %s117
      %s132 = sphi 0, %s118
      %s138 = sphi 0, %s140
      %s141 = sphi 0, %s138
      %s142 = sphi 0, %s141
      %s158 = sphi 0, %s142
    $region4: #{tpu_custom_call.1} parent=1 // loop_header_branch
      %21 = sbr.rel (%p19) target = $region8
    $region5: #{tpu_custom_call.1} parent=1 // loop_body
      %s23 = ssub.s32 %s18, 1
      %s24 = ssub.s32 %s18, 2
      %s25 = sadd.s32 %s18, 1
      %s26 = ssub.s32 %s18, %s25
      %p27 = scmp.eq.s32.totalorder %s26, 0
      %s29 = sadd.s32 %s28, 1
      %s30 = scalar_select %p27, %s28, %s29
      %p33 = pneg %p27
      %p34 = scmp.eq.s32.totalorder %s18, 1
      %p35 = por %p33, %p34
      %p36 = scmp.ne.s32.totalorder %s28, %s31
      %p37 = scmp.eq.s32.totalorder %s18, 0
      %p38 = por %p36, %p37
      %p39 = scmp.ne.s32.totalorder %s28, %s31
      %p40 = scmp.eq.s32.totalorder %s23, 1
      %p41 = por %p39, %p40
      %p42 = scmp.ne.s32.totalorder %s31, %s32
      %p43 = scmp.eq.s32.totalorder %s23, 0
      %p44 = por %p42, %p43
      %p45 = scmp.ne.s32.totalorder %s31, %s32
      %p46 = scmp.eq.s32.totalorder %s24, 1
      %p47 = por %p45, %p46
      %p49 = scmp.ne.s32.totalorder %s32, %s48
      %p50 = scmp.eq.s32.totalorder %s24, 0
      %p51 = por %p49, %p50
      %s53 = sadd.s32 %s52, 1
      %p56 = scmp.eq.s32.totalorder %s18, 1
      %p57 = scmp.ne.s32.totalorder %s52, %s54
      %p58 = scmp.eq.s32.totalorder %s18, 0
      %p59 = por %p57, %p58
      %p60 = scmp.ne.s32.totalorder %s52, %s54
      %p61 = scmp.eq.s32.totalorder %s23, 1
      %p62 = por %p60, %p61
      %p63 = scmp.ne.s32.totalorder %s54, %s55
      %p64 = scmp.eq.s32.totalorder %s23, 0
      %p65 = por %p63, %p64
      %p66 = scmp.ne.s32.totalorder %s54, %s55
      %p67 = scmp.eq.s32.totalorder %s24, 1
      %p68 = por %p66, %p67
      %p70 = scmp.ne.s32.totalorder %s55, %s69
      %p71 = scmp.eq.s32.totalorder %s24, 0
      %p72 = por %p70, %p71
      %s74 = sadd.s32 %s73, 1
      %p77 = scmp.eq.s32.totalorder %s18, 1
      %p78 = scmp.ne.s32.totalorder %s73, %s75
      %p79 = scmp.eq.s32.totalorder %s18, 0
      %p80 = por %p78, %p79
      %p81 = scmp.ne.s32.totalorder %s73, %s75
      %p82 = scmp.eq.s32.totalorder %s23, 1
      %p83 = por %p81, %p82
      %p84 = scmp.ne.s32.totalorder %s75, %s76
      %p85 = scmp.eq.s32.totalorder %s23, 0
      %p86 = por %p84, %p85
      %p87 = scmp.ne.s32.totalorder %s75, %s76
      %p88 = scmp.eq.s32.totalorder %s24, 1
      %p89 = por %p87, %p88
      %p91 = scmp.ne.s32.totalorder %s76, %s90
      %p92 = scmp.eq.s32.totalorder %s24, 0
      %p93 = por %p91, %p92
      %s95 = sadd.s32 %s94, 1
      %p98 = scmp.eq.s32.totalorder %s18, 1
      %p99 = scmp.ne.s32.totalorder %s94, %s96
      %p100 = scmp.eq.s32.totalorder %s18, 0
      %p101 = por %p99, %p100
      %p102 = scmp.ne.s32.totalorder %s94, %s96
      %p103 = scmp.eq.s32.totalorder %s23, 1
      %p104 = por %p102, %p103
      %p105 = scmp.ne.s32.totalorder %s96, %s97
      %p106 = scmp.eq.s32.totalorder %s23, 0
      %p107 = por %p105, %p106
      %p108 = scmp.ne.s32.totalorder %s96, %s97
      %p109 = scmp.eq.s32.totalorder %s24, 1
      %p110 = por %p108, %p109
      %p112 = scmp.ne.s32.totalorder %s97, %s111
      %p113 = scmp.eq.s32.totalorder %s24, 0
      %p114 = por %p112, %p113
      %s116 = sadd.s32 %s115, 1
      %p119 = scmp.eq.s32.totalorder %s18, 1
      %p120 = scmp.ne.s32.totalorder %s115, %s117
      %p121 = scmp.eq.s32.totalorder %s18, 0
      %p122 = por %p120, %p121
      %p123 = scmp.ne.s32.totalorder %s115, %s117
      %p124 = scmp.eq.s32.totalorder %s23, 1
      %p125 = por %p123, %p124
      %p126 = scmp.ne.s32.totalorder %s117, %s118
      %p127 = scmp.eq.s32.totalorder %s23, 0
      %p128 = por %p126, %p127
      %p129 = scmp.ne.s32.totalorder %s117, %s118
      %p130 = scmp.eq.s32.totalorder %s24, 1
      %p131 = por %p129, %p130
      %p133 = scmp.ne.s32.totalorder %s118, %s132
      %p134 = scmp.eq.s32.totalorder %s24, 0
      %p135 = por %p133, %p134
      %s136 = ssub.s32 %s18, %s25
      %p137 = scmp.eq.s32.totalorder %s136, 0
      %s139 = sadd.s32 %s138, 1
      %s140 = scalar_select %p137, %s138, %s139
      %p143 = pneg %p137
      %p144 = scmp.eq.s32.totalorder %s18, 1
      %p145 = por %p143, %p144
      %p146 = scmp.ne.s32.totalorder %s138, %s141
      %p147 = scmp.eq.s32.totalorder %s18, 0
      %p148 = por %p146, %p147
      %p149 = scmp.ne.s32.totalorder %s138, %s141
      %p150 = scmp.eq.s32.totalorder %s23, 1
      %p151 = por %p149, %p150
      %p152 = scmp.ne.s32.totalorder %s141, %s142
      %p153 = scmp.eq.s32.totalorder %s23, 0
      %p154 = por %p152, %p153
      %p155 = scmp.ne.s32.totalorder %s141, %s142
      %p156 = scmp.eq.s32.totalorder %s24, 1
      %p157 = por %p155, %p156
      %p159 = scmp.ne.s32.totalorder %s142, %s158
      %p160 = scmp.eq.s32.totalorder %s24, 0
      %p161 = por %p159, %p160
      %p162 = scmp.le.s32.totalorder 1, %s18
      %p163 = scmp.lt.s32.totalorder %s18, 3
      %p164 = pnand %p162, %p163
      %p165 = pneg %p164
      // Predicated region
      $region9: #{tpu_custom_call.1} parent=5 // pred_check
        _
      $region10: #{tpu_custom_call.1} parent=5 // pred_check_branch
        %167 = sbr.rel (%p164) target = $region12
      $region11: #{tpu_custom_call.1} parent=5 // pred_region
        %s168 = ssub.s32 %s18, 1
        // Predicated region
        $region13: #{tpu_custom_call.1} parent=11 // pred_check
          %p169 = pneg %p65
        $region14: #{tpu_custom_call.1} parent=11 // pred_check_branch
          %171 = sbr.rel (%p169) target = $region16
        $region15: #{tpu_custom_call.1} parent=11 // pred_region
          %s173 = ssub.s32 1024, 1024
          %174 = vsyncadd [#allocation6], %s173
          %s175 = sshll.u32 [#allocation5], 4
          %s176 = int_to_ptr.vmem [resolvable:$true] %s175
          %181 = dma.hbm_to_vmem [thread:$0]  %s1, 1024, %s176, [#allocation6], 128, 128, 8
        $region16: #{tpu_custom_call.1} parent=11 // pred_fallthru
          _
        // Predicated region
        $region17: #{tpu_custom_call.1} parent=11 // pred_check
          %p182 = pneg %p86
        $region18: #{tpu_custom_call.1} parent=11 // pred_check_branch
          %184 = sbr.rel (%p182) target = $region20
        $region19: #{tpu_custom_call.1} parent=11 // pred_region
          _
        $region20: #{tpu_custom_call.1} parent=11 // pred_fallthru
          _
        // Predicated region
        $region21: #{tpu_custom_call.1} parent=11 // pred_check
          %p185 = pneg %p107
        $region22: #{tpu_custom_call.1} parent=11 // pred_check_branch
          %187 = sbr.rel (%p185) target = $region24
        $region23: #{tpu_custom_call.1} parent=11 // pred_region
          %s189 = ssub.s32 2048, 2048
          %190 = vsyncadd [#allocation6], %s189
          %s191 = sshll.u32 [#allocation7], 4
          %s192 = int_to_ptr.vmem [resolvable:$true] %s191
          %197 = dma.hbm_to_vmem [thread:$0]  %s3, 2048, %s192, [#allocation6], 128, 128, 8
        $region24: #{tpu_custom_call.1} parent=11 // pred_fallthru
          _
        // Predicated region
        $region25: #{tpu_custom_call.1} parent=11 // pred_check
          %p198 = pneg %p128
        $region26: #{tpu_custom_call.1} parent=11 // pred_check_branch
          %200 = sbr.rel (%p198) target = $region28
        $region27: #{tpu_custom_call.1} parent=11 // pred_region
          _
        $region28: #{tpu_custom_call.1} parent=11 // pred_fallthru
          _
      $region12: #{tpu_custom_call.1} parent=5 // pred_fallthru
        _
      %p201 = scmp.lt.s32.totalorder %s18, 2
      // Predicated region
      $region29: #{tpu_custom_call.1} parent=5 // pred_check
        %p202 = pneg %p201
      $region30: #{tpu_custom_call.1} parent=5 // pred_check_branch
        %204 = sbr.rel (%p202) target = $region32
      $region31: #{tpu_custom_call.1} parent=5 // pred_region
        // Predicated region
        $region33: #{tpu_custom_call.1} parent=31 // pred_check
          %p205 = pneg %p38
        $region34: #{tpu_custom_call.1} parent=31 // pred_check_branch
          %207 = sbr.rel (%p205) target = $region36
        $region35: #{tpu_custom_call.1} parent=31 // pred_region
          %s208 = sand.u32 %s28, 1
          %s209 = scalar_lea.sflag [#allocation3], %s208
          %s210 = sand.u32 %s28, 1
          %s211 = smul.addr %s210, 16
          %s212 = scalar_lea.vmem [#allocation2], %s211
          %s213 = smul.u32 2, %s18
          %s215 = ssub.s32 256, 256
          %216 = vsyncadd %s209, %s215
          %s217 = smul.addr %s213, 128
          %s218 = scalar_lea.hbm %s0, %s217
          %s219 = sshll.u32 %s212, 4
          %s220 = int_to_ptr.vmem [resolvable:$true] %s219
          %225 = dma.hbm_to_vmem [thread:$0]  %s218, 256, %s220, %s209, 128, 128, 8
        $region36: #{tpu_custom_call.1} parent=31 // pred_fallthru
          _
      $region32: #{tpu_custom_call.1} parent=5 // pred_fallthru
        _
      %p226 = scmp.le.s32.totalorder 1, %s18
      %p227 = scmp.lt.s32.totalorder %s18, 3
      %p228 = pnand %p226, %p227
      %p229 = pneg %p228
      // Predicated region
      $region37: #{tpu_custom_call.1} parent=5 // pred_check
        _
      $region38: #{tpu_custom_call.1} parent=5 // pred_check_branch
        %231 = sbr.rel (%p228) target = $region40
      $region39: #{tpu_custom_call.1} parent=5 // pred_region
        %s232 = ssub.s32 %s18, 1
        %s233 = sand.u32 %s31, 1
        %s234 = scalar_lea.sflag [#allocation3], %s233
        %s235 = sand.u32 %s31, 1
        %s236 = smul.addr %s235, 16
        %s237 = scalar_lea.vmem [#allocation2], %s236
        // Predicated region
        $region41: #{tpu_custom_call.1} parent=39 // pred_check
          %p238 = pneg %p44
        $region42: #{tpu_custom_call.1} parent=39 // pred_check_branch
          %240 = sbr.rel (%p238) target = $region44
        $region43: #{tpu_custom_call.1} parent=39 // pred_region
          %241 = dma.done %s234, 256
        $region44: #{tpu_custom_call.1} parent=39 // pred_fallthru
          _
        // Predicated region
        $region45: #{tpu_custom_call.1} parent=39 // pred_check
          %p242 = pneg %p65
        $region46: #{tpu_custom_call.1} parent=39 // pred_check_branch
          %244 = sbr.rel (%p242) target = $region48
        $region47: #{tpu_custom_call.1} parent=39 // pred_region
          %245 = dma.done [#allocation6], 1024
        $region48: #{tpu_custom_call.1} parent=39 // pred_fallthru
          _
        // Predicated region
        $region49: #{tpu_custom_call.1} parent=39 // pred_check
          %p246 = pneg %p107
        $region50: #{tpu_custom_call.1} parent=39 // pred_check_branch
          %248 = sbr.rel (%p246) target = $region52
        $region51: #{tpu_custom_call.1} parent=39 // pred_region
          %249 = dma.done [#allocation6], 2048
        $region52: #{tpu_custom_call.1} parent=39 // pred_fallthru
          _
        %s250 = sand.u32 %s31, 1
        %s251 = scalar_lea.sflag [#allocation3], %s250
        %s252 = sand.u32 %s31, 1
        %s253 = smul.addr %s252, 16
        %s254 = scalar_lea.vmem [#allocation2], %s253
        %p255 = pneg %p44
        %p256 = pneg %p41
        %p257 = pneg %p65
        %p258 = pneg %p62
        %p259 = pneg %p86
        %p260 = pneg %p83
        %p261 = pneg %p107
        %p262 = pneg %p104
        %p263 = pneg %p128
        %p264 = pneg %p125
        %p265 = pneg %p154
        %p266 = pneg %p151
        %s267 = sand.u32 %s141, 1
        %s268 = scalar_lea.sflag [#allocation4], %s267
        %s269 = sand.u32 %s141, 1
        %s270 = smul.addr %s269, 16
        %s271 = scalar_lea.vmem [#allocation8], %s270
        %s272 = smul.u32 2, %s23
        %s273 = smul.u32 2, %s23
        %v274 = vld [vmem:[%s237] sm:$0xff]
        %v275 = vld [vmem:[%s237 + $0x8] sm:$0xff]
        %v276 = vld [vmem:[#allocation5] sm:$0xff]
        %v277 = vld [vmem:[#allocation5 + $0x8] sm:$0xff]
        %v278 = vld [vmem:[#allocation5 + $0x10] sm:$0xff]
        %v279 = vld [vmem:[#allocation5 + $0x18] sm:$0xff]
        %v280 = vld [vmem:[#allocation5 + $0x20] sm:$0xff]
        %v281 = vld [vmem:[#allocation5 + $0x28] sm:$0xff]
        %v282 = vld [vmem:[#allocation5 + $0x30] sm:$0xff]
        %v283 = vld [vmem:[#allocation5 + $0x38] sm:$0xff]
        %v284 = vld [vmem:[%s2] sm:$0x1]
        %v286 = vlaneseq
        %v287 = vshrl.u32 %v286, 7
        %v288 = vsub.s32 0, %v287
        %v289 = vrot.slane %v284, %v288
        %vm291 = vcmask 523264
        %v293 = vsel %vm291, %v274, 0
        %v296 = vsel %vm291, %v275, 0
        %298 = vmatprep.subr.mxu0 0.0
        %299 = vmatpush1.msra.mxu0 %v276
        %300 = vmatprep.subr.mxu0 0.0
        %301 = vmatpush1.msra.mxu0 %v277
        %302 = vmatprep.subr.mxu0 0.0
        %303 = vmatpush1.msra.mxu0 %v278
        %304 = vmatprep.subr.mxu0 0.0
        %305 = vmatpush1.msra.mxu0 %v279
        %306 = vmatprep.subr.mxu0 0.0
        %307 = vmatpush1.msra.mxu0 %v280
        %308 = vmatprep.subr.mxu0 0.0
        %309 = vmatpush1.msra.mxu0 %v281
        %310 = vmatprep.subr.mxu0 0.0
        %311 = vmatpush1.msra.mxu0 %v282
        %312 = vmatprep.subr.mxu0 0.0
        %313 = vmatpush1.msra.mxu0 %v283
        %314 = vmatprep.subr.mxu0 0.0
        %315 = vmatpush1.msra.mxu0 0.0
        %316 = vmatprep.subr.mxu0 0.0
        %317 = vmatpush1.msra.mxu0 0.0
        %318 = vmatprep.subr.mxu0 0.0
        %319 = vmatpush1.msra.mxu0 0.0
        %320 = vmatprep.subr.mxu0 0.0
        %321 = vmatpush1.msra.mxu0 0.0
        %322 = vmatprep.subr.mxu0 0.0
        %323 = vmatpush1.msra.mxu0 0.0
        %324 = vmatprep.subr.mxu0 0.0
        %325 = vmatpush1.msra.mxu0 0.0
        %326 = vmatprep.subr.mxu0 0.0
        %327 = vmatpush1.msra.mxu0 0.0
        %328 = vmatprep.subr.mxu0 0.0
        %329 = vmatpush1.msra.mxu0 0.0
        %330 = vmatprep.subr.mxu0 0.0
        %331 = vmatpush1.msra.mxu0 0.0
        %332 = vmatprep.subr.mxu0 0.0
        %333 = vmatpush1.msra.mxu0 0.0
        %334 = vmatprep.subr.mxu0 0.0
        %335 = vmatpush1.msra.mxu0 0.0
        %336 = vmatprep.subr.mxu0 0.0
        %337 = vmatpush1.msra.mxu0 0.0
        %338 = vmatprep.subr.mxu0 0.0
        %339 = vmatpush1.msra.mxu0 0.0
        %340 = vmatprep.subr.mxu0 0.0
        %341 = vmatpush1.msra.mxu0 0.0
        %342 = vmatprep.subr.mxu0 0.0
        %343 = vmatpush1.msra.mxu0 0.0
        %344 = vmatprep.subr.mxu0 0.0
        %345 = vmatpush1.msra.mxu0 0.0
        %346 = vmatprep.subr.mxu0 0.0
        %347 = vmatpush1.msra.mxu0 0.0
        %348 = vmatprep.subr.mxu0 0.0
        %349 = vmatpush1.msra.mxu0 0.0
        %350 = vmatprep.subr.mxu0 0.0
        %351 = vmatpush1.msra.mxu0 0.0
        %352 = vmatprep.subr.mxu0 0.0
        %353 = vmatpush1.msra.mxu0 0.0
        %354 = vmatprep.subr.mxu0 0.0
        %355 = vmatpush1.msra.mxu0 0.0
        %356 = vmatprep.subr.mxu0 0.0
        %357 = vmatpush1.msra.mxu0 0.0
        %358 = vmatprep.subr.mxu0 0.0
        %359 = vmatpush1.msra.mxu0 0.0
        %360 = vmatprep.subr.mxu0 0.0
        %361 = vmatpush1.msra.mxu0 0.0
        %362 = vmatprep.mubr.f32.mxu0 0.0
        %363 = vmatmul.mubr.f32.gmra.mrb[0].mxu0 %v293
        %v364 = vpop.f32.mrb[0].mxu0
        %v365 = vadd.f32 %v289, %v364
        %v366 = vpop.f32.mrb[0].mxu0
        %367 = vmatprep.mubr.f32.mxu0 0.0
        %368 = vmatmul.mubr.f32.gmra.mrb[0].mxu0 %v296
        %v369 = vpop.f32.mrb[0].mxu0
        %v370 = vadd.f32 %v289, %v369
        %v371 = vpop.f32.mrb[0].mxu0
        %372 = vdwg.mxu0
        %v373 = vmul.f32 %v365, 0.5
        %v374 = vmul.f32 %v370, 0.5
        %v375 = vmul.f32 %v365, 0.70710677
        %v376 = vmul.f32 %v370, 0.70710677
        %v377 = verf.f32.pop %v375
        %v378 = verf.f32.pop %v376
        %v379 = vadd.f32 %v377, 1.0
        %v380 = vadd.f32 %v378, 1.0
        %v381 = vmul.f32 %v373, %v379
        %v382 = vmul.f32 %v374, %v380
        %v383 = vld [vmem:[#allocation7] sm:$0xff]
        %v384 = vld [vmem:[#allocation7 + $0x8] sm:$0xff]
        %v385 = vld [vmem:[#allocation7 + $0x10] sm:$0xff]
        %v386 = vld [vmem:[#allocation7 + $0x18] sm:$0xff]
        %v387 = vld [vmem:[#allocation7 + $0x20] sm:$0xff]
        %v388 = vld [vmem:[#allocation7 + $0x28] sm:$0xff]
        %v389 = vld [vmem:[#allocation7 + $0x30] sm:$0xff]
        %v390 = vld [vmem:[#allocation7 + $0x38] sm:$0xff]
        %v391 = vld [vmem:[#allocation7 + $0x40] sm:$0xff]
        %v392 = vld [vmem:[#allocation7 + $0x48] sm:$0xff]
        %v393 = vld [vmem:[#allocation7 + $0x50] sm:$0xff]
        %v394 = vld [vmem:[#allocation7 + $0x58] sm:$0xff]
        %v395 = vld [vmem:[#allocation7 + $0x60] sm:$0xff]
        %v396 = vld [vmem:[#allocation7 + $0x68] sm:$0xff]
        %v397 = vld [vmem:[#allocation7 + $0x70] sm:$0xff]
        %v398 = vld [vmem:[#allocation7 + $0x78] sm:$0xff]
        %v399 = vld [vmem:[%s4] sm:$0x1]
        %v401 = vlaneseq
        %v402 = vshrl.u32 %v401, 7
        %v403 = vsub.s32 0, %v402
        %v404 = vrot.slane %v399, %v403
        %406 = vmatprep.subr.mxu0 0.0
        %407 = vmatpush1.msra.mxu0 %v383
        %408 = vmatprep.subr.mxu0 0.0
        %409 = vmatpush1.msra.mxu0 %v384
        %410 = vmatprep.subr.mxu0 0.0
        %411 = vmatpush1.msra.mxu0 %v385
        %412 = vmatprep.subr.mxu0 0.0
        %413 = vmatpush1.msra.mxu0 %v386
        %414 = vmatprep.subr.mxu0 0.0
        %415 = vmatpush1.msra.mxu0 %v387
        %416 = vmatprep.subr.mxu0 0.0
        %417 = vmatpush1.msra.mxu0 %v388
        %418 = vmatprep.subr.mxu0 0.0
        %419 = vmatpush1.msra.mxu0 %v389
        %420 = vmatprep.subr.mxu0 0.0
        %421 = vmatpush1.msra.mxu0 %v390
        %422 = vmatprep.subr.mxu0 0.0
        %423 = vmatpush1.msra.mxu0 %v391
        %424 = vmatprep.subr.mxu0 0.0
        %425 = vmatpush1.msra.mxu0 %v392
        %426 = vmatprep.subr.mxu0 0.0
        %427 = vmatpush1.msra.mxu0 %v393
        %428 = vmatprep.subr.mxu0 0.0
        %429 = vmatpush1.msra.mxu0 %v394
        %430 = vmatprep.subr.mxu0 0.0
        %431 = vmatpush1.msra.mxu0 %v395
        %432 = vmatprep.subr.mxu0 0.0
        %433 = vmatpush1.msra.mxu0 %v396
        %434 = vmatprep.subr.mxu0 0.0
        %435 = vmatpush1.msra.mxu0 %v397
        %436 = vmatprep.subr.mxu0 0.0
        %437 = vmatpush1.msra.mxu0 %v398
        %438 = vmatprep.subr.mxu0 0.0
        %439 = vmatpush1.msra.mxu0 0.0
        %440 = vmatprep.subr.mxu0 0.0
        %441 = vmatpush1.msra.mxu0 0.0
        %442 = vmatprep.subr.mxu0 0.0
        %443 = vmatpush1.msra.mxu0 0.0
        %444 = vmatprep.subr.mxu0 0.0
        %445 = vmatpush1.msra.mxu0 0.0
        %446 = vmatprep.subr.mxu0 0.0
        %447 = vmatpush1.msra.mxu0 0.0
        %448 = vmatprep.subr.mxu0 0.0
        %449 = vmatpush1.msra.mxu0 0.0
        %450 = vmatprep.subr.mxu0 0.0
        %451 = vmatpush1.msra.mxu0 0.0
        %452 = vmatprep.subr.mxu0 0.0
        %453 = vmatpush1.msra.mxu0 0.0
        %454 = vmatprep.subr.mxu0 0.0
        %455 = vmatpush1.msra.mxu0 0.0
        %456 = vmatprep.subr.mxu0 0.0
        %457 = vmatpush1.msra.mxu0 0.0
        %458 = vmatprep.subr.mxu0 0.0
        %459 = vmatpush1.msra.mxu0 0.0
        %460 = vmatprep.subr.mxu0 0.0
        %461 = vmatpush1.msra.mxu0 0.0
        %462 = vmatprep.subr.mxu0 0.0
        %463 = vmatpush1.msra.mxu0 0.0
        %464 = vmatprep.subr.mxu0 0.0
        %465 = vmatpush1.msra.mxu0 0.0
        %466 = vmatprep.subr.mxu0 0.0
        %467 = vmatpush1.msra.mxu0 0.0
        %468 = vmatprep.subr.mxu0 0.0
        %469 = vmatpush1.msra.mxu0 0.0
        %470 = vmatprep.mubr.f32.mxu0 0.0
        %471 = vmatmul.mubr.f32.gmra.mrb[0].mxu0 %v381
        %v472 = vpop.f32.mrb[0].mxu0
        %v473 = vadd.f32 %v404, %v472
        %v474 = vpop.f32.mrb[0].mxu0
        %475 = vmatprep.mubr.f32.mxu0 0.0
        %476 = vmatmul.mubr.f32.gmra.mrb[0].mxu0 %v382
        %v477 = vpop.f32.mrb[0].mxu0
        %v478 = vadd.f32 %v404, %v477
        %v479 = vpop.f32.mrb[0].mxu0
        %480 = vdwg.mxu0
        %481 = vst [vmem:[%s271] sm:$0xff] %v473
        %482 = vst [vmem:[%s271 + $0x8] sm:$0xff] %v478
        %s483 = sand.u32 %s141, 1
        %s484 = scalar_lea.sflag [#allocation4], %s483
        %s485 = sand.u32 %s141, 1
        %s486 = smul.addr %s485, 16
        %s487 = scalar_lea.vmem [#allocation8], %s486
        // Predicated region
        $region53: #{tpu_custom_call.1} parent=39 // pred_check
          %p488 = pneg %p151
        $region54: #{tpu_custom_call.1} parent=39 // pred_check_branch
          %490 = sbr.rel (%p488) target = $region56
        $region55: #{tpu_custom_call.1} parent=39 // pred_region
          %s491 = smul.u32 2, %s23
          %s493 = ssub.s32 256, 256
          %494 = vsyncadd %s484, %s493
          %s495 = smul.addr %s491, 128
          %s496 = scalar_lea.hbm %s5, %s495
          %s497 = sshll.u32 %s487, 4
          %s498 = int_to_ptr.vmem [resolvable:$true] %s497
          %503 = dma.vmem_to_hbm [thread:$0]  %s498, 256, %s496, %s484, 128, 128, 8
        $region56: #{tpu_custom_call.1} parent=39 // pred_fallthru
          _
      $region40: #{tpu_custom_call.1} parent=5 // pred_fallthru
        _
      %p504 = scmp.le.s32.totalorder 2, %s18
      // Predicated region
      $region57: #{tpu_custom_call.1} parent=5 // pred_check
        %p505 = pneg %p504
      $region58: #{tpu_custom_call.1} parent=5 // pred_check_branch
        %507 = sbr.rel (%p505) target = $region60
      $region59: #{tpu_custom_call.1} parent=5 // pred_region
        %s508 = ssub.s32 %s18, 2
        // Predicated region
        $region61: #{tpu_custom_call.1} parent=59 // pred_check
          %p509 = pneg %p157
        $region62: #{tpu_custom_call.1} parent=59 // pred_check_branch
          %511 = sbr.rel (%p509) target = $region64
        $region63: #{tpu_custom_call.1} parent=59 // pred_region
          %s512 = sand.u32 %s142, 1
          %s513 = scalar_lea.sflag [#allocation4], %s512
          %s514 = sand.u32 %s142, 1
          %s515 = smul.addr %s514, 16
          %s516 = scalar_lea.vmem [#allocation8], %s515
          %517 = dma.done %s513, 256
        $region64: #{tpu_custom_call.1} parent=59 // pred_fallthru
          _
      $region60: #{tpu_custom_call.1} parent=5 // pred_fallthru
        _
    $region6: #{tpu_custom_call.1} parent=1 // loop_footer
      %s22 = sadd.s32 1, %s18
    $region7: #{tpu_custom_call.1} parent=1 // loop_footer_branch
      %17 = sbr.rel target = $region3
    $region8: #{tpu_custom_call.1} parent=1 // loop_exit
      _
    %518 = vsyncpa [#allocation3], 1
    %s519 = scalar_lea.sflag [#allocation3], 1
    %520 = vsyncpa %s519, 1
    %521 = vsyncpa [#allocation6], 1
    %522 = vsyncpa [#allocation4], 1
    %s523 = scalar_lea.sflag [#allocation4], 1
    %524 = vsyncpa %s523, 1

// kernel: tpu_custom_call.1
$region0: #{tpu_custom_call.1}
  #allocation0 [shape = 'u32[]', space=smem, size = 0x4, offset = 0x4, fixed_abs, tag = 'smem constant byte address 0x4 - core index']
  #allocation1 [shape = 'u32[144,128]{1,0:T(1,128)}', space=vmem, size = 0x12000, scoped, tag = 'internal scratch']
  %s0 = inlined_call_operand.hbm [shape: f32[32,64], index: 0, kind: input, shape index: {}]
  %s1 = inlined_call_operand.hbm [shape: f32[64,128], index: 1, kind: input, shape index: {}]
  %s2 = inlined_call_operand.vmem [shape: f32[1,128], index: 2, kind: input, shape index: {}]
  %s3 = inlined_call_operand.hbm [shape: f32[128,128], index: 3, kind: input, shape index: {}]
  %s4 = inlined_call_operand.vmem [shape: f32[1,128], index: 4, kind: input, shape index: {}]
  %s5 = inlined_call_operand.hbm [shape: f32[32,128], index: 5, kind: output, shape index: {}]
  %s6 = sld [smem:[#allocation0]]
  $region65: #{tpu_custom_call.1} parent=0
    _
  %s8 = ssub.s32 1, %s6
  %s9 = scalar_select 0, %s8, %s6
  $region1: #{tpu_custom_call.1} parent=0
    #allocation2 [shape = 'u8[16384]{0}', space=vmem, size = 0x4000, scoped, tag = 'input window, operand 0']
    #allocation3 [shape = 's32[2]{0}', space=sflag, size = 0x8, scoped, tag = 'scoped memory for tpu_custom_call.1']
    #allocation4 [shape = 's32[2]{0}', space=sflag, size = 0x8, scoped, tag = 'scoped memory for tpu_custom_call.1']
    #allocation5 [shape = 'u8[32768]{0}', space=vmem, size = 0x8000, scoped, tag = 'input window, operand 1, single buffered']
    #allocation6 [shape = 's32[1]{0}', space=sflag, size = 0x4, scoped, tag = 'scoped memory for tpu_custom_call.1']
    #allocation7 [shape = 'u8[65536]{0}', space=vmem, size = 0x10000, scoped, tag = 'input window, operand 3, single buffered']
    #allocation8 [shape = 'u8[16384]{0}', space=vmem, size = 0x4000, scoped, tag = 'output window, operand 0']
    %10 = vsyncpa [#allocation3], 0
    %s11 = scalar_lea.sflag [#allocation3], 1
    %12 = vsyncpa %s11, 0
    %13 = vsyncpa [#allocation6], 0
    %14 = vsyncpa [#allocation4], 0
    %s15 = scalar_lea.sflag [#allocation4], 1
    %16 = vsyncpa %s15, 0
    loop: start=0, step=1, limit=4
    $region2: #{tpu_custom_call.1} parent=1 // loop_pre_header
      _
    $region3: #{tpu_custom_call.1} parent=1 // loop_header
      %s18 = sphi 0, %s22
      %p19 = scmp.ge.s32.totalorder %s18, 4
      %s28 = sphi 0, %s30
      %s31 = sphi 0, %s28
      %s32 = sphi 0, %s31
      %s48 = sphi 0, %s32
      %s52 = sphi 0, %s52
      %s54 = sphi 0, %s52
      %s55 = sphi 0, %s54
      %s69 = sphi 0, %s55
      %s73 = sphi 0, %s73
      %s75 = sphi 0, %s73
      %s76 = sphi 0, %s75
      %s90 = sphi 0, %s76
      %s94 = sphi 0, %s94
      %s96 = sphi 0, %s94
      %s97 = sphi 0, %s96
      %s111 = sphi 0, %s97
      %s115 = sphi 0, %s115
      %s117 = sphi 0, %s115
      %s118 = sphi 0, %s117
      %s132 = sphi 0, %s118
      %s138 = sphi 0, %s140
      %s141 = sphi 0, %s138
      %s142 = sphi 0, %s141
      %s158 = sphi 0, %s142
    $region4: #{tpu_custom_call.1} parent=1 // loop_header_branch
      %21 = sbr.rel (%p19) target = $region8
    $region5: #{tpu_custom_call.1} parent=1 // loop_body
      %s23 = ssub.s32 %s18, 1
      %s24 = ssub.s32 %s18, 2
      %s25 = sadd.s32 %s18, 1
      %s26 = ssub.s32 %s18, %s25
      %p27 = scmp.eq.s32.totalorder %s26, 0
      %s29 = sadd.s32 %s28, 1
      %s30 = scalar_select %p27, %s28, %s29
      %p33 = pneg %p27
      %p34 = scmp.eq.s32.totalorder %s18, 1
      %p35 = por %p33, %p34
      %p36 = scmp.ne.s32.totalorder %s28, %s31
      %p37 = scmp.eq.s32.totalorder %s18, 0
      %p38 = por %p36, %p37
      %p39 = scmp.ne.s32.totalorder %s28, %s31
      %p40 = scmp.eq.s32.totalorder %s23, 1
      %p41 = por %p39, %p40
      %p42 = scmp.ne.s32.totalorder %s31, %s32
      %p43 = scmp.eq.s32.totalorder %s23, 0
      %p44 = por %p42, %p43
      %p45 = scmp.ne.s32.totalorder %s31, %s32
      %p46 = scmp.eq.s32.totalorder %s24, 1
      %p47 = por %p45, %p46
      %p49 = scmp.ne.s32.totalorder %s32, %s48
      %p50 = scmp.eq.s32.totalorder %s24, 0
      %p51 = por %p49, %p50
      %s53 = sadd.s32 %s52, 1
      %p56 = scmp.eq.s32.totalorder %s18, 1
      %p57 = scmp.ne.s32.totalorder %s52, %s54
      %p58 = scmp.eq.s32.totalorder %s18, 0
      %p59 = por %p57, %p58
      %p60 = scmp.ne.s32.totalorder %s52, %s54
      %p61 = scmp.eq.s32.totalorder %s23, 1
      %p62 = por %p60, %p61
      %p63 = scmp.ne.s32.totalorder %s54, %s55
      %p64 = scmp.eq.s32.totalorder %s23, 0
      %p65 = por %p63, %p64
      %p66 = scmp.ne.s32.totalorder %s54, %s55
      %p67 = scmp.eq.s32.totalorder %s24, 1
      %p68 = por %p66, %p67
      %p70 = scmp.ne.s32.totalorder %s55, %s69
      %p71 = scmp.eq.s32.totalorder %s24, 0
      %p72 = por %p70, %p71
      %s74 = sadd.s32 %s73, 1
      %p77 = scmp.eq.s32.totalorder %s18, 1
      %p78 = scmp.ne.s32.totalorder %s73, %s75
      %p79 = scmp.eq.s32.totalorder %s18, 0
      %p80 = por %p78, %p79
      %p81 = scmp.ne.s32.totalorder %s73, %s75
      %p82 = scmp.eq.s32.totalorder %s23, 1
      %p83 = por %p81, %p82
      %p84 = scmp.ne.s32.totalorder %s75, %s76
      %p85 = scmp.eq.s32.totalorder %s23, 0
      %p86 = por %p84, %p85
      %p87 = scmp.ne.s32.totalorder %s75, %s76
      %p88 = scmp.eq.s32.totalorder %s24, 1
      %p89 = por %p87, %p88
      %p91 = scmp.ne.s32.totalorder %s76, %s90
      %p92 = scmp.eq.s32.totalorder %s24, 0
      %p93 = por %p91, %p92
      %s95 = sadd.s32 %s94, 1
      %p98 = scmp.eq.s32.totalorder %s18, 1
      %p99 = scmp.ne.s32.totalorder %s94, %s96
      %p100 = scmp.eq.s32.totalorder %s18, 0
      %p101 = por %p99, %p100
      %p102 = scmp.ne.s32.totalorder %s94, %s96
      %p103 = scmp.eq.s32.totalorder %s23, 1
      %p104 = por %p102, %p103
      %p105 = scmp.ne.s32.totalorder %s96, %s97
      %p106 = scmp.eq.s32.totalorder %s23, 0
      %p107 = por %p105, %p106
      %p108 = scmp.ne.s32.totalorder %s96, %s97
      %p109 = scmp.eq.s32.totalorder %s24, 1
      %p110 = por %p108, %p109
      %p112 = scmp.ne.s32.totalorder %s97, %s111
      %p113 = scmp.eq.s32.totalorder %s24, 0
      %p114 = por %p112, %p113
      %s116 = sadd.s32 %s115, 1
      %p119 = scmp.eq.s32.totalorder %s18, 1
      %p120 = scmp.ne.s32.totalorder %s115, %s117
      %p121 = scmp.eq.s32.totalorder %s18, 0
      %p122 = por %p120, %p121
      %p123 = scmp.ne.s32.totalorder %s115, %s117
      %p124 = scmp.eq.s32.totalorder %s23, 1
      %p125 = por %p123, %p124
      %p126 = scmp.ne.s32.totalorder %s117, %s118
      %p127 = scmp.eq.s32.totalorder %s23, 0
      %p128 = por %p126, %p127
      %p129 = scmp.ne.s32.totalorder %s117, %s118
      %p130 = scmp.eq.s32.totalorder %s24, 1
      %p131 = por %p129, %p130
      %p133 = scmp.ne.s32.totalorder %s118, %s132
      %p134 = scmp.eq.s32.totalorder %s24, 0
      %p135 = por %p133, %p134
      %s136 = ssub.s32 %s18, %s25
      %p137 = scmp.eq.s32.totalorder %s136, 0
      %s139 = sadd.s32 %s138, 1
      %s140 = scalar_select %p137, %s138, %s139
      %p143 = pneg %p137
      %p144 = scmp.eq.s32.totalorder %s18, 1
      %p145 = por %p143, %p144
      %p146 = scmp.ne.s32.totalorder %s138, %s141
      %p147 = scmp.eq.s32.totalorder %s18, 0
      %p148 = por %p146, %p147
      %p149 = scmp.ne.s32.totalorder %s138, %s141
      %p150 = scmp.eq.s32.totalorder %s23, 1
      %p151 = por %p149, %p150
      %p152 = scmp.ne.s32.totalorder %s141, %s142
      %p153 = scmp.eq.s32.totalorder %s23, 0
      %p154 = por %p152, %p153
      %p155 = scmp.ne.s32.totalorder %s141, %s142
      %p156 = scmp.eq.s32.totalorder %s24, 1
      %p157 = por %p155, %p156
      %p159 = scmp.ne.s32.totalorder %s142, %s158
      %p160 = scmp.eq.s32.totalorder %s24, 0
      %p161 = por %p159, %p160
      %p162 = scmp.le.s32.totalorder 1, %s18
      %p163 = scmp.lt.s32.totalorder %s18, 3
      %p164 = pnand %p162, %p163
      %p165 = pneg %p164
      // Predicated region
      $region9: #{tpu_custom_call.1} parent=5 // pred_check
        _
      $region10: #{tpu_custom_call.1} parent=5 // pred_check_branch
        %167 = sbr.rel (%p164) target = $region12
      $region11: #{tpu_custom_call.1} parent=5 // pred_region
        %s168 = ssub.s32 %s18, 1
        // Predicated region
        $region13: #{tpu_custom_call.1} parent=11 // pred_check
          %p169 = pneg %p65
        $region14: #{tpu_custom_call.1} parent=11 // pred_check_branch
          %171 = sbr.rel (%p169) target = $region16
        $region15: #{tpu_custom_call.1} parent=11 // pred_region
          %s173 = ssub.s32 1024, 1024
          %174 = vsyncadd [#allocation6], %s173
          %s175 = sshll.u32 [#allocation5], 4
          %s176 = int_to_ptr.vmem [resolvable:$true] %s175
          %181 = dma.hbm_to_vmem [thread:$0]  %s1, 1024, %s176, [#allocation6], 128, 128, 8
        $region16: #{tpu_custom_call.1} parent=11 // pred_fallthru
          _
        // Predicated region
        $region17: #{tpu_custom_call.1} parent=11 // pred_check
          %p182 = pneg %p86
        $region18: #{tpu_custom_call.1} parent=11 // pred_check_branch
          %184 = sbr.rel (%p182) target = $region20
        $region19: #{tpu_custom_call.1} parent=11 // pred_region
          _
        $region20: #{tpu_custom_call.1} parent=11 // pred_fallthru
          _
        // Predicated region
        $region21: #{tpu_custom_call.1} parent=11 // pred_check
          %p185 = pneg %p107
        $region22: #{tpu_custom_call.1} parent=11 // pred_check_branch
          %187 = sbr.rel (%p185) target = $region24
        $region23: #{tpu_custom_call.1} parent=11 // pred_region
          %s189 = ssub.s32 2048, 2048
          %190 = vsyncadd [#allocation6], %s189
          %s191 = sshll.u32 [#allocation7], 4
          %s192 = int_to_ptr.vmem [resolvable:$true] %s191
          %197 = dma.hbm_to_vmem [thread:$0]  %s3, 2048, %s192, [#allocation6], 128, 128, 8
        $region24: #{tpu_custom_call.1} parent=11 // pred_fallthru
          _
        // Predicated region
        $region25: #{tpu_custom_call.1} parent=11 // pred_check
          %p198 = pneg %p128
        $region26: #{tpu_custom_call.1} parent=11 // pred_check_branch
          %200 = sbr.rel (%p198) target = $region28
        $region27: #{tpu_custom_call.1} parent=11 // pred_region
          _
        $region28: #{tpu_custom_call.1} parent=11 // pred_fallthru
          _
      $region12: #{tpu_custom_call.1} parent=5 // pred_fallthru
        _
      %p201 = scmp.lt.s32.totalorder %s18, 2
      // Predicated region
      $region29: #{tpu_custom_call.1} parent=5 // pred_check
        %p202 = pneg %p201
      $region30: #{tpu_custom_call.1} parent=5 // pred_check_branch
        %204 = sbr.rel (%p202) target = $region32
      $region31: #{tpu_custom_call.1} parent=5 // pred_region
        // Predicated region
        $region33: #{tpu_custom_call.1} parent=31 // pred_check
          %p205 = pneg %p38
        $region34: #{tpu_custom_call.1} parent=31 // pred_check_branch
          %207 = sbr.rel (%p205) target = $region36
        $region35: #{tpu_custom_call.1} parent=31 // pred_region
          %s208 = sand.u32 %s28, 1
          %s209 = scalar_lea.sflag [#allocation3], %s208
          %s210 = sand.u32 %s28, 1
          %s211 = smul.addr %s210, 16
          %s212 = scalar_lea.vmem [#allocation2], %s211
          %s213 = smul.u32 2, %s18
          %s215 = ssub.s32 256, 256
          %216 = vsyncadd %s209, %s215
          %s217 = smul.addr %s213, 128
          %s218 = scalar_lea.hbm %s0, %s217
          %s219 = sshll.u32 %s212, 4
          %s220 = int_to_ptr.vmem [resolvable:$true] %s219
          %225 = dma.hbm_to_vmem [thread:$0]  %s218, 256, %s220, %s209, 128, 128, 8
        $region36: #{tpu_custom_call.1} parent=31 // pred_fallthru
          _
      $region32: #{tpu_custom_call.1} parent=5 // pred_fallthru
        _
      %p226 = scmp.le.s32.totalorder 1, %s18
      %p227 = scmp.lt.s32.totalorder %s18, 3
      %p228 = pnand %p226, %p227
      %p229 = pneg %p228
      // Predicated region
      $region37: #{tpu_custom_call.1} parent=5 // pred_check
        _
      $region38: #{tpu_custom_call.1} parent=5 // pred_check_branch
        %231 = sbr.rel (%p228) target = $region40
      $region39: #{tpu_custom_call.1} parent=5 // pred_region
        %s232 = ssub.s32 %s18, 1
        %s233 = sand.u32 %s31, 1
        %s234 = scalar_lea.sflag [#allocation3], %s233
        %s235 = sand.u32 %s31, 1
        %s236 = smul.addr %s235, 16
        %s237 = scalar_lea.vmem [#allocation2], %s236
        // Predicated region
        $region41: #{tpu_custom_call.1} parent=39 // pred_check
          %p238 = pneg %p44
        $region42: #{tpu_custom_call.1} parent=39 // pred_check_branch
          %240 = sbr.rel (%p238) target = $region44
        $region43: #{tpu_custom_call.1} parent=39 // pred_region
          %241 = dma.done %s234, 256
        $region44: #{tpu_custom_call.1} parent=39 // pred_fallthru
          _
        // Predicated region
        $region45: #{tpu_custom_call.1} parent=39 // pred_check
          %p242 = pneg %p65
        $region46: #{tpu_custom_call.1} parent=39 // pred_check_branch
          %244 = sbr.rel (%p242) target = $region48
        $region47: #{tpu_custom_call.1} parent=39 // pred_region
          %245 = dma.done [#allocation6], 1024
        $region48: #{tpu_custom_call.1} parent=39 // pred_fallthru
          _
        // Predicated region
        $region49: #{tpu_custom_call.1} parent=39 // pred_check
          %p246 = pneg %p107
        $region50: #{tpu_custom_call.1} parent=39 // pred_check_branch
          %248 = sbr.rel (%p246) target = $region52
        $region51: #{tpu_custom_call.1} parent=39 // pred_region
          %249 = dma.done [#allocation6], 2048
        $region52: #{tpu_custom_call.1} parent=39 // pred_fallthru
          _
        %s250 = sand.u32 %s31, 1
        %s251 = scalar_lea.sflag [#allocation3], %s250
        %s252 = sand.u32 %s31, 1
        %s253 = smul.addr %s252, 16
        %s254 = scalar_lea.vmem [#allocation2], %s253
        %p255 = pneg %p44
        %p256 = pneg %p41
        %p257 = pneg %p65
        %p258 = pneg %p62
        %p259 = pneg %p86
        %p260 = pneg %p83
        %p261 = pneg %p107
        %p262 = pneg %p104
        %p263 = pneg %p128
        %p264 = pneg %p125
        %p265 = pneg %p154
        %p266 = pneg %p151
        %s267 = sand.u32 %s141, 1
        %s268 = scalar_lea.sflag [#allocation4], %s267
        %s269 = sand.u32 %s141, 1
        %s270 = smul.addr %s269, 16
        %s271 = scalar_lea.vmem [#allocation8], %s270
        %s272 = smul.u32 2, %s23
        %s273 = smul.u32 2, %s23
        %v274 = vld [vmem:[%s237] sm:$0xff]
        %v275 = vld [vmem:[%s237 + $0x8] sm:$0xff]
        %v276 = vld [vmem:[#allocation5] sm:$0xff]
        %v277 = vld [vmem:[#allocation5 + $0x8] sm:$0xff]
        %v278 = vld [vmem:[#allocation5 + $0x10] sm:$0xff]
        %v279 = vld [vmem:[#allocation5 + $0x18] sm:$0xff]
        %v280 = vld [vmem:[#allocation5 + $0x20] sm:$0xff]
        %v281 = vld [vmem:[#allocation5 + $0x28] sm:$0xff]
        %v282 = vld [vmem:[#allocation5 + $0x30] sm:$0xff]
        %v283 = vld [vmem:[#allocation5 + $0x38] sm:$0xff]
        %v284 = vld [vmem:[%s2] sm:$0x1]
        %v286 = vlaneseq
        %v287 = vshrl.u32 %v286, 7
        %v288 = vsub.s32 0, %v287
        %v289 = vrot.slane %v284, %v288
        %vm291 = vcmask 523264
        %v293 = vsel %vm291, %v274, 0
        %v296 = vsel %vm291, %v275, 0
        %298 = vmatprep.subr.mxu0 0.0
        %299 = vmatpush1.msra.mxu0 %v276
        %300 = vmatprep.subr.mxu0 0.0
        %301 = vmatpush1.msra.mxu0 %v277
        %302 = vmatprep.subr.mxu0 0.0
        %303 = vmatpush1.msra.mxu0 %v278
        %304 = vmatprep.subr.mxu0 0.0
        %305 = vmatpush1.msra.mxu0 %v279
        %306 = vmatprep.subr.mxu0 0.0
        %307 = vmatpush1.msra.mxu0 %v280
        %308 = vmatprep.subr.mxu0 0.0
        %309 = vmatpush1.msra.mxu0 %v281
        %310 = vmatprep.subr.mxu0 0.0
        %311 = vmatpush1.msra.mxu0 %v282
        %312 = vmatprep.subr.mxu0 0.0
        %313 = vmatpush1.msra.mxu0 %v283
        %314 = vmatprep.subr.mxu0 0.0
        %315 = vmatpush1.msra.mxu0 0.0
        %316 = vmatprep.subr.mxu0 0.0
        %317 = vmatpush1.msra.mxu0 0.0
        %318 = vmatprep.subr.mxu0 0.0
        %319 = vmatpush1.msra.mxu0 0.0
        %320 = vmatprep.subr.mxu0 0.0
        %321 = vmatpush1.msra.mxu0 0.0
        %322 = vmatprep.subr.mxu0 0.0
        %323 = vmatpush1.msra.mxu0 0.0
        %324 = vmatprep.subr.mxu0 0.0
        %325 = vmatpush1.msra.mxu0 0.0
        %326 = vmatprep.subr.mxu0 0.0
        %327 = vmatpush1.msra.mxu0 0.0
        %328 = vmatprep.subr.mxu0 0.0
        %329 = vmatpush1.msra.mxu0 0.0
        %330 = vmatprep.subr.mxu0 0.0
        %331 = vmatpush1.msra.mxu0 0.0
        %332 = vmatprep.subr.mxu0 0.0
        %333 = vmatpush1.msra.mxu0 0.0
        %334 = vmatprep.subr.mxu0 0.0
        %335 = vmatpush1.msra.mxu0 0.0
        %336 = vmatprep.subr.mxu0 0.0
        %337 = vmatpush1.msra.mxu0 0.0
        %338 = vmatprep.subr.mxu0 0.0
        %339 = vmatpush1.msra.mxu0 0.0
        %340 = vmatprep.subr.mxu0 0.0
        %341 = vmatpush1.msra.mxu0 0.0
        %342 = vmatprep.subr.mxu0 0.0
        %343 = vmatpush1.msra.mxu0 0.0
        %344 = vmatprep.subr.mxu0 0.0
        %345 = vmatpush1.msra.mxu0 0.0
        %346 = vmatprep.subr.mxu0 0.0
        %347 = vmatpush1.msra.mxu0 0.0
        %348 = vmatprep.subr.mxu0 0.0
        %349 = vmatpush1.msra.mxu0 0.0
        %350 = vmatprep.subr.mxu0 0.0
        %351 = vmatpush1.msra.mxu0 0.0
        %352 = vmatprep.subr.mxu0 0.0
        %353 = vmatpush1.msra.mxu0 0.0
        %354 = vmatprep.subr.mxu0 0.0
        %355 = vmatpush1.msra.mxu0 0.0
        %356 = vmatprep.subr.mxu0 0.0
        %357 = vmatpush1.msra.mxu0 0.0
        %358 = vmatprep.subr.mxu0 0.0
        %359 = vmatpush1.msra.mxu0 0.0
        %360 = vmatprep.subr.mxu0 0.0
        %361 = vmatpush1.msra.mxu0 0.0
        %362 = vmatprep.mubr.f32.mxu0 0.0
        %363 = vmatmul.mubr.f32.gmra.mrb[0].mxu0 %v293
        %v364 = vpop.f32.mrb[0].mxu0
        %v365 = vadd.f32 %v289, %v364
        %v366 = vpop.f32.mrb[0].mxu0
        %367 = vmatprep.mubr.f32.mxu0 0.0
        %368 = vmatmul.mubr.f32.gmra.mrb[0].mxu0 %v296
        %v369 = vpop.f32.mrb[0].mxu0
        %v370 = vadd.f32 %v289, %v369
        %v371 = vpop.f32.mrb[0].mxu0
        %372 = vdwg.mxu0
        %v373 = vmul.f32 %v365, 0.5
        %v374 = vmul.f32 %v370, 0.5
        %v375 = vmul.f32 %v365, 0.70710677
        %v376 = vmul.f32 %v370, 0.70710677
        %v377 = verf.f32.pop %v375
        %v378 = verf.f32.pop %v376
        %v379 = vadd.f32 %v377, 1.0
        %v380 = vadd.f32 %v378, 1.0
        %v381 = vmul.f32 %v373, %v379
        %v382 = vmul.f32 %v374, %v380
        %v383 = vld [vmem:[#allocation7] sm:$0xff]
        %v384 = vld [vmem:[#allocation7 + $0x8] sm:$0xff]
        %v385 = vld [vmem:[#allocation7 + $0x10] sm:$0xff]
        %v386 = vld [vmem:[#allocation7 + $0x18] sm:$0xff]
        %v387 = vld [vmem:[#allocation7 + $0x20] sm:$0xff]
        %v388 = vld [vmem:[#allocation7 + $0x28] sm:$0xff]
        %v389 = vld [vmem:[#allocation7 + $0x30] sm:$0xff]
        %v390 = vld [vmem:[#allocation7 + $0x38] sm:$0xff]
        %v391 = vld [vmem:[#allocation7 + $0x40] sm:$0xff]
        %v392 = vld [vmem:[#allocation7 + $0x48] sm:$0xff]
        %v393 = vld [vmem:[#allocation7 + $0x50] sm:$0xff]
        %v394 = vld [vmem:[#allocation7 + $0x58] sm:$0xff]
        %v395 = vld [vmem:[#allocation7 + $0x60] sm:$0xff]
        %v396 = vld [vmem:[#allocation7 + $0x68] sm:$0xff]
        %v397 = vld [vmem:[#allocation7 + $0x70] sm:$0xff]
        %v398 = vld [vmem:[#allocation7 + $0x78] sm:$0xff]
        %v399 = vld [vmem:[%s4] sm:$0x1]
        %v401 = vlaneseq
        %v402 = vshrl.u32 %v401, 7
        %v403 = vsub.s32 0, %v402
        %v404 = vrot.slane %v399, %v403
        %406 = vmatprep.subr.mxu0 0.0
        %407 = vmatpush1.msra.mxu0 %v383
        %408 = vmatprep.subr.mxu0 0.0
        %409 = vmatpush1.msra.mxu0 %v384
        %410 = vmatprep.subr.mxu0 0.0
        %411 = vmatpush1.msra.mxu0 %v385
        %412 = vmatprep.subr.mxu0 0.0
        %413 = vmatpush1.msra.mxu0 %v386
        %414 = vmatprep.subr.mxu0 0.0
        %415 = vmatpush1.msra.mxu0 %v387
        %416 = vmatprep.subr.mxu0 0.0
        %417 = vmatpush1.msra.mxu0 %v388
        %418 = vmatprep.subr.mxu0 0.0
        %419 = vmatpush1.msra.mxu0 %v389
        %420 = vmatprep.subr.mxu0 0.0
        %421 = vmatpush1.msra.mxu0 %v390
        %422 = vmatprep.subr.mxu0 0.0
        %423 = vmatpush1.msra.mxu0 %v391
        %424 = vmatprep.subr.mxu0 0.0
        %425 = vmatpush1.msra.mxu0 %v392
        %426 = vmatprep.subr.mxu0 0.0
        %427 = vmatpush1.msra.mxu0 %v393
        %428 = vmatprep.subr.mxu0 0.0
        %429 = vmatpush1.msra.mxu0 %v394
        %430 = vmatprep.subr.mxu0 0.0
        %431 = vmatpush1.msra.mxu0 %v395
        %432 = vmatprep.subr.mxu0 0.0
        %433 = vmatpush1.msra.mxu0 %v396
        %434 = vmatprep.subr.mxu0 0.0
        %435 = vmatpush1.msra.mxu0 %v397
        %436 = vmatprep.subr.mxu0 0.0
        %437 = vmatpush1.msra.mxu0 %v398
        %438 = vmatprep.subr.mxu0 0.0
        %439 = vmatpush1.msra.mxu0 0.0
        %440 = vmatprep.subr.mxu0 0.0
        %441 = vmatpush1.msra.mxu0 0.0
        %442 = vmatprep.subr.mxu0 0.0
        %443 = vmatpush1.msra.mxu0 0.0
        %444 = vmatprep.subr.mxu0 0.0
        %445 = vmatpush1.msra.mxu0 0.0
        %446 = vmatprep.subr.mxu0 0.0
        %447 = vmatpush1.msra.mxu0 0.0
        %448 = vmatprep.subr.mxu0 0.0
        %449 = vmatpush1.msra.mxu0 0.0
        %450 = vmatprep.subr.mxu0 0.0
        %451 = vmatpush1.msra.mxu0 0.0
        %452 = vmatprep.subr.mxu0 0.0
        %453 = vmatpush1.msra.mxu0 0.0
        %454 = vmatprep.subr.mxu0 0.0
        %455 = vmatpush1.msra.mxu0 0.0
        %456 = vmatprep.subr.mxu0 0.0
        %457 = vmatpush1.msra.mxu0 0.0
        %458 = vmatprep.subr.mxu0 0.0
        %459 = vmatpush1.msra.mxu0 0.0
        %460 = vmatprep.subr.mxu0 0.0
        %461 = vmatpush1.msra.mxu0 0.0
        %462 = vmatprep.subr.mxu0 0.0
        %463 = vmatpush1.msra.mxu0 0.0
        %464 = vmatprep.subr.mxu0 0.0
        %465 = vmatpush1.msra.mxu0 0.0
        %466 = vmatprep.subr.mxu0 0.0
        %467 = vmatpush1.msra.mxu0 0.0
        %468 = vmatprep.subr.mxu0 0.0
        %469 = vmatpush1.msra.mxu0 0.0
        %470 = vmatprep.mubr.f32.mxu0 0.0
        %471 = vmatmul.mubr.f32.gmra.mrb[0].mxu0 %v381
        %v472 = vpop.f32.mrb[0].mxu0
        %v473 = vadd.f32 %v404, %v472
        %v474 = vpop.f32.mrb[0].mxu0
        %475 = vmatprep.mubr.f32.mxu0 0.0
        %476 = vmatmul.mubr.f32.gmra.mrb[0].mxu0 %v382
        %v477 = vpop.f32.mrb[0].mxu0
        %v478 = vadd.f32 %v404, %v477
        %v479 = vpop.f32.mrb[0].mxu0
        %480 = vdwg.mxu0
        %481 = vst [vmem:[%s271] sm:$0xff] %v473
        %482 = vst [vmem:[%s271 + $0x8] sm:$0xff] %v478
        %s483 = sand.u32 %s141, 1
        %s484 = scalar_lea.sflag [#allocation4], %s483
        %s485 = sand.u32 %s141, 1
        %s486 = smul.addr %s485, 16
        %s487 = scalar_lea.vmem [#allocation8], %s486
        // Predicated region
        $region53: #{tpu_custom_call.1} parent=39 // pred_check
          %p488 = pneg %p151
        $region54: #{tpu_custom_call.1} parent=39 // pred_check_branch
          %490 = sbr.rel (%p488) target = $region56
        $region55: #{tpu_custom_call.1} parent=39 // pred_region
          %s491 = smul.u32 2, %s23
          %s493 = ssub.s32 256, 256
          %494 = vsyncadd %s484, %s493
          %s495 = smul.addr %s491, 128
          %s496 = scalar_lea.hbm %s5, %s495
          %s497 = sshll.u32 %s487, 4
          %s498 = int_to_ptr.vmem [resolvable:$true] %s497
          %503 = dma.vmem_to_hbm [thread:$0]  %s498, 256, %s496, %s484, 128, 128, 8
        $region56: #{tpu_custom_call.1} parent=39 // pred_fallthru
          _
      $region40: #{tpu_custom_call.1} parent=5 // pred_fallthru
        _
      %p504 = scmp.le.s32.totalorder 2, %s18
      // Predicated region
      $region57: #{tpu_custom_call.1} parent=5 // pred_check
        %p505 = pneg %p504
      $region58: #{tpu_custom_call.1} parent=5 // pred_check_branch
        %507 = sbr.rel (%p505) target = $region60
      $region59: #{tpu_custom_call.1} parent=5 // pred_region
        %s508 = ssub.s32 %s18, 2
        // Predicated region
        $region61: #{tpu_custom_call.1} parent=59 // pred_check
          %p509 = pneg %p157
        $region62: #{tpu_custom_call.1} parent=59 // pred_check_branch
          %511 = sbr.rel (%p509) target = $region64
        $region63: #{tpu_custom_call.1} parent=59 // pred_region
          %s512 = sand.u32 %s142, 1
          %s513 = scalar_lea.sflag [#allocation4], %s512
          %s514 = sand.u32 %s142, 1
          %s515 = smul.addr %s514, 16
          %s516 = scalar_lea.vmem [#allocation8], %s515
          %517 = dma.done %s513, 256
        $region64: #{tpu_custom_call.1} parent=59 // pred_fallthru
          _
      $region60: #{tpu_custom_call.1} parent=5 // pred_fallthru
        _
    $region6: #{tpu_custom_call.1} parent=1 // loop_footer
      %s22 = sadd.s32 1, %s18
    $region7: #{tpu_custom_call.1} parent=1 // loop_footer_branch
      %17 = sbr.rel target = $region3
    $region8: #{tpu_custom_call.1} parent=1 // loop_exit
      _
    %518 = vsyncpa [#allocation3], 1
    %s519 = scalar_lea.sflag [#allocation3], 1
    %520 = vsyncpa %s519, 1
    %521 = vsyncpa [#allocation6], 1
    %522 = vsyncpa [#allocation4], 1
    %s523 = scalar_lea.sflag [#allocation4], 1
    %524 = vsyncpa %s523, 1

</llo_original>
